<compile_context>
chip_gen: v5e
topology: v5e:2x2
jax: 0.10.0
libtpu: 0.0.40
codegen_flags: <defaults>
</compile_context>

<pallas_src>
import functools

import jax
import jax.numpy as jnp
from jax.experimental import pallas as pl
from jax.experimental.pallas import tpu as pltpu


def _ca_net_kernel(x_ref, w_ref, b_ref, eps_ref, out_ref, *, c_dim):
    """One batch tile: fused Linear + ReLU + reparametrization, all in VMEM."""
    # Single fused matmul over the full 2*c_dim output width, f32 accumulation.
    h = jnp.dot(x_ref[...], w_ref[...], preferred_element_type=jnp.float32)
    h = jnp.maximum(h + b_ref[...], 0.0)             # bias + ReLU (VPU)

    mu = h[:, :c_dim]                                 # 128-lane-aligned slice: free
    logvar = h[:, c_dim:]
    std = jnp.exp(0.5 * logvar)                       # EUP slot
    c_code = eps_ref[...] * std + mu                  # VPU FMA (eps stays f32)

    # One lane-dense (tb, 3*c_dim) store: [c_code | mu | logvar].
    out_ref[...] = jnp.concatenate([c_code, mu, logvar], axis=-1).astype(out_ref.dtype)


def _round_up(x, m):
    return ((x + m - 1) // m) * m


def _cdiv(a, b):
    return -(-a // b)


def _choose_batch_tiling(batch, max_tb):
    """Pick (tile_rows, padded_batch): large multiple-of-8 tiles, and >= 2 grid
    steps whenever the batch allows (so both v7x TensorCores get work)."""
    b8 = _round_up(batch, 8)
    n_steps = _cdiv(b8, min(max_tb, b8))
    if n_steps < 2 and b8 >= 16:
        n_steps = 2
    tb = _round_up(_cdiv(b8, n_steps), 8)
    return tb, _round_up(b8, tb)


def _vmem_estimate(tb, t_dim, c_dim, in_itemsize, out_itemsize, weight_bufs):
    """Honest per-call VMEM estimate (bytes)."""
    return (2 * tb * t_dim * in_itemsize            # x tile (double-buffered)
            + 2 * tb * c_dim * 4                    # eps tile (always f32, 2 bufs)
            + 2 * tb * 3 * c_dim * out_itemsize     # packed output tile (2 bufs)
            + weight_bufs * t_dim * 2 * c_dim * in_itemsize   # resident weight
            + weight_bufs * 2 * c_dim * 4)          # resident bias


def ca_net_forward(text_embedding, weight_t, bias, eps, *,
                   compute_dtype=None, out_dtype=jnp.float32):
    """CA_NET forward pass as a single batch-tiled Pallas call.

    Args:
      text_embedding: (B, t_dim) float32.
      weight_t:       (t_dim, 2*c_dim) transposed nn.Linear weight, columns
                      ordered [mu | logvar] exactly like the fc layer.
      bias:           (1, 2*c_dim) float32.
      eps:            (B, c_dim) float32 standard-normal noise (supplied so the
                      kernel is deterministic / testable).
      compute_dtype:  optional matmul-input dtype; jnp.bfloat16 is valid on all
                      of v5e/v6e/v7x (accumulation stays float32).
      out_dtype:      output dtype; bf16 halves HBM writeback if downstream
                      consumers tolerate it.

    Returns:
      (c_code, mu, logvar), each (B, c_dim) with dtype `out_dtype`.
    """
    B, t_dim = text_embedding.shape
    two_c = weight_t.shape[1]
    c_dim = two_c // 2
    assert two_c == 2 * c_dim
    assert eps.shape == (B, c_dim)
    assert bias.shape == (1, two_c)

    bias = bias.astype(jnp.float32)
    eps = eps.astype(jnp.float32)
    if compute_dtype is not None:                    # bf16 path (any generation)
        text_embedding = text_embedding.astype(compute_dtype)
        weight_t = weight_t.astype(compute_dtype)

    in_isz = jnp.dtype(text_embedding.dtype).itemsize
    out_isz = jnp.dtype(out_dtype).itemsize

    # Generation-aware VMEM budgeting.
    try:
        phys_vmem = int(pltpu.get_tpu_info().vmem_capacity_bytes)
    except Exception:                                # interpret mode / old runtimes
        phys_vmem = 64 << 20                         # assume smallest (v7x per-TC)
    vmem_budget = phys_vmem // 2                     # headroom for internal scratch

    # Large batch tiles: tiny tiles pay ~0.35 us/step and inefficient DMAs.
    # Allow 1024-row tiles on 128-MiB-VMEM parts (v5e/v6e), 512 otherwise (v7x).
    max_tb = 1024 if phys_vmem >= (96 << 20) else 512
    tb, b_pad = _choose_batch_tiling(B, max_tb)
    while tb > 8 and _vmem_estimate(tb, t_dim, c_dim, in_isz, out_isz, 1) > vmem_budget:
        tb = max(8, ((tb // 2) // 8) * 8)
        b_pad = _round_up(_round_up(B, 8), tb)
    grid = (b_pad // tb,)

    if b_pad != B:                                   # pad batch; sliced off below
        text_embedding = jnp.pad(text_embedding, ((0, b_pad - B), (0, 0)))
        eps = jnp.pad(eps, ((0, b_pad - B), (0, 0)))

    vmem_est = _vmem_estimate(tb, t_dim, c_dim, in_isz, out_isz, 1)
    cp_kwargs = dict(dimension_semantics=("parallel",))
    if vmem_est > (16 << 20):                        # above v5e's default scoped limit
        cp_kwargs["vmem_limit_bytes"] = int(
            min(max(int(1.5 * vmem_est), 32 << 20), vmem_budget))

    kernel = functools.partial(_ca_net_kernel, c_dim=c_dim)
    packed_shape = jax.ShapeDtypeStruct((b_pad, 3 * c_dim), out_dtype)

    def run(single_buffer_weights):
        # Constant-index weight/bias blocks: DMA'd once, stay VMEM-resident.
        w_kw = {"pipeline_mode": pl.Buffered(1)} if single_buffer_weights else {}
        in_specs = [
            pl.BlockSpec((tb, t_dim), lambda i: (i, 0)),
            pl.BlockSpec((t_dim, two_c), lambda i: (0, 0), **w_kw),
            pl.BlockSpec((1, two_c), lambda i: (0, 0), **w_kw),
            pl.BlockSpec((tb, c_dim), lambda i: (i, 0)),
        ]
        out_spec = pl.BlockSpec((tb, 3 * c_dim), lambda i: (i, 0))
        return pl.pallas_call(
            kernel,
            grid=grid,
            out_shape=packed_shape,
            in_specs=in_specs,
            out_specs=out_spec,
            compiler_params=pltpu.CompilerParams(**cp_kwargs),
        )(text_embedding, weight_t, bias, eps)

    try:
        packed = jax.block_until_ready(run(single_buffer_weights=True))
    except Exception:
        # Some Pallas versions reject buffer_count=1; default double-buffering
        # only costs a little extra VMEM for the resident weights.
        packed = jax.block_until_ready(run(single_buffer_weights=False))

    c_code = packed[:B, :c_dim]
    mu = packed[:B, c_dim:2 * c_dim]
    logvar = packed[:B, 2 * c_dim:]
    return c_code, mu, logvar


def ca_net_reference(text_embedding, weight_t, bias, eps):
    """Pure-JAX reference for correctness checking."""
    h = jnp.maximum(text_embedding @ weight_t + bias, 0.0)
    c_dim = weight_t.shape[1] // 2
    mu = h[:, :c_dim]
    logvar = h[:, c_dim:]
    return eps * jnp.exp(0.5 * logvar) + mu, mu, logvar


if __name__ == "__main__":
    # Small, lane-friendly shapes. B=20 deliberately exercises the cdiv-grid /
    # pad-and-slice path (padded to 32 rows, two 16-row tiles -> 2 grid steps).
    B, T_DIM, C_DIM = 20, 128, 128

    key = jax.random.PRNGKey(0)
    k_x, k_w, k_b, k_eps = jax.random.split(key, 4)

    text_embedding = jax.random.normal(k_x, (B, T_DIM), dtype=jnp.float32)

    # Deterministic nn.Linear-style init: U(-1/sqrt(t_dim), 1/sqrt(t_dim)).
    bound = 1.0 / (T_DIM ** 0.5)
    weight_t = jax.random.uniform(
        k_w, (T_DIM, 2 * C_DIM), minval=-bound, maxval=bound, dtype=jnp.float32)
    bias = jax.random.uniform(
        k_b, (1, 2 * C_DIM), minval=-bound, maxval=bound, dtype=jnp.float32)

    # Noise for the reparametrization trick, generated outside the kernel so the
    # run is deterministic and matches the reference exactly.
    # TODO(synk): torch's in-module normal_() sampling could be reproduced inside
    # the kernel with pltpu.prng_seed + pltpu.stateful_normal if nondeterministic
    # sampling is desired.
    eps = jax.random.normal(k_eps, (B, C_DIM), dtype=jnp.float32)

    c_code, mu, logvar = jax.block_until_ready(
        ca_net_forward(text_embedding, weight_t, bias, eps))

    c_ref, mu_ref, lv_ref = ca_net_reference(text_embedding, weight_t, bias, eps)
    assert c_code.shape == (B, C_DIM)
    assert mu.shape == (B, C_DIM)
    assert logvar.shape == (B, C_DIM)
    assert jnp.allclose(mu, mu_ref, atol=1e-4, rtol=1e-4)
    assert jnp.allclose(logvar, lv_ref, atol=1e-4, rtol=1e-4)
    assert jnp.allclose(c_code, c_ref, atol=1e-4, rtol=1e-4)

    print("KERNEL_OK")
</pallas_src>

<mosaic_0001>
module attributes {stable_mosaic.version = 11 : i64} {
  func.func @_ca_net_kernel(%arg0: i32, %arg1: memref<16x128xf32, #tpu.memory_space<vmem>>, %arg2: memref<128x256xf32, #tpu.memory_space<vmem>>, %arg3: memref<1x256xf32, #tpu.memory_space<vmem>>, %arg4: memref<16x128xf32, #tpu.memory_space<vmem>>, %arg5: memref<16x384xf32, #tpu.memory_space<vmem>>) attributes {dimension_semantics = [#tpu.dimension_semantics<parallel>], iteration_bounds = array<i64: 2>, scalar_prefetch = 0 : i64, scratch_operands = 0 : i64, tpu.core_type = #tpu.core_type<tc>, window_params = [{transform_indices = @transform_0, window_bounds = array<i64: 16, 128>}, {pipeline_mode = #tpu.pipeline_mode<synchronous>, transform_indices = @transform_1, window_bounds = array<i64: 128, 256>}, {pipeline_mode = #tpu.pipeline_mode<synchronous>, transform_indices = @transform_2, window_bounds = array<i64: 1, 256>}, {transform_indices = @transform_3, window_bounds = array<i64: 16, 128>}, {transform_indices = @transform_4, window_bounds = array<i64: 16, 384>}]} {
    %c0 = arith.constant 0 : index
    %c0_0 = arith.constant 0 : index
    %0 = vector.load %arg1[%c0, %c0_0] : memref<16x128xf32, #tpu.memory_space<vmem>>, vector<16x128xf32>
    %c0_1 = arith.constant 0 : index
    %c0_2 = arith.constant 0 : index
    %1 = vector.load %arg2[%c0_1, %c0_2] : memref<128x256xf32, #tpu.memory_space<vmem>>, vector<128x256xf32>
    %cst = arith.constant dense<0.000000e+00> : vector<16x256xf32>
    %2 = tpu.matmul %0, %1, %cst {dimension_numbers = #tpu.dot_dimension_numbers<[1], [0], [0], [1], [0, 0, 1, 1], [], []>} : vector<16x128xf32>, vector<128x256xf32>, vector<16x256xf32> -> vector<16x256xf32>
    %c0_3 = arith.constant 0 : index
    %c0_4 = arith.constant 0 : index
    %3 = vector.load %arg3[%c0_3, %c0_4] : memref<1x256xf32, #tpu.memory_space<vmem>>, vector<1x256xf32>
    %4 = vector.broadcast %3 : vector<1x256xf32> to vector<16x256xf32>
    %5 = arith.addf %2, %4 : vector<16x256xf32>
    %cst_5 = arith.constant 0.000000e+00 : f32
    %6 = vector.broadcast %cst_5 : f32 to vector<16x256xf32>
    %7 = arith.maximumf %5, %6 : vector<16x256xf32>
    %8 = vector.extract_strided_slice %7 {offsets = [0, 0], sizes = [16, 128], strides = [1, 1]} : vector<16x256xf32> to vector<16x128xf32>
    %9 = vector.extract_strided_slice %7 {offsets = [0, 128], sizes = [16, 128], strides = [1, 1]} : vector<16x256xf32> to vector<16x128xf32>
    %cst_6 = arith.constant 5.000000e-01 : f32
    %10 = vector.broadcast %cst_6 : f32 to vector<16x128xf32>
    %11 = arith.mulf %10, %9 : vector<16x128xf32>
    %12 = math.exp %11 : vector<16x128xf32>
    %c0_7 = arith.constant 0 : index
    %c0_8 = arith.constant 0 : index
    %13 = vector.load %arg4[%c0_7, %c0_8] : memref<16x128xf32, #tpu.memory_space<vmem>>, vector<16x128xf32>
    %14 = arith.mulf %13, %12 : vector<16x128xf32>
    %15 = arith.addf %14, %8 : vector<16x128xf32>
    %16 = tpu.concatenate %15, %8, %9 in 1 : vector<16x128xf32>, vector<16x128xf32>, vector<16x128xf32> -> vector<16x384xf32>
    %c0_9 = arith.constant 0 : index
    %c0_10 = arith.constant 0 : index
    %17 = vector.load %arg5[%c0_9, %c0_10] : memref<16x384xf32, #tpu.memory_space<vmem>>, vector<16x384xf32>
    tpu.vector_store %arg5[%c0_9, %c0_10], %16 {strides = array<i32>} : memref<16x384xf32, #tpu.memory_space<vmem>>, vector<16x384xf32>,
    return
  }
  func.func @transform_0(%arg0: i32) -> (i32, i32) {
    %c0_i32 = arith.constant 0 : i32
    %c0_i32_0 = arith.constant 0 : i32
    return %arg0, %c0_i32 : i32, i32
  }
  func.func @transform_1(%arg0: i32) -> (i32, i32) {
    %c0_i32 = arith.constant 0 : i32
    %c0_i32_0 = arith.constant 0 : i32
    %c0_i32_1 = arith.constant 0 : i32
    return %c0_i32, %c0_i32_0 : i32, i32
  }
  func.func @transform_2(%arg0: i32) -> (i32, i32) {
    %c0_i32 = arith.constant 0 : i32
    %c0_i32_0 = arith.constant 0 : i32
    %c0_i32_1 = arith.constant 0 : i32
    return %c0_i32, %c0_i32_0 : i32, i32
  }
  func.func @transform_3(%arg0: i32) -> (i32, i32) {
    %c0_i32 = arith.constant 0 : i32
    %c0_i32_0 = arith.constant 0 : i32
    return %arg0, %c0_i32 : i32, i32
  }
  func.func @transform_4(%arg0: i32) -> (i32, i32) {
    %c0_i32 = arith.constant 0 : i32
    %c0_i32_0 = arith.constant 0 : i32
    return %arg0, %c0_i32 : i32, i32
  }
}

module attributes {stable_mosaic.version = 11 : i64} {
  func.func @_ca_net_kernel(%arg0: i32, %arg1: memref<16x128xf32, #tpu.memory_space<vmem>>, %arg2: memref<128x256xf32, #tpu.memory_space<vmem>>, %arg3: memref<1x256xf32, #tpu.memory_space<vmem>>, %arg4: memref<16x128xf32, #tpu.memory_space<vmem>>, %arg5: memref<16x384xf32, #tpu.memory_space<vmem>>) attributes {dimension_semantics = [#tpu.dimension_semantics<parallel>], iteration_bounds = array<i64: 2>, scalar_prefetch = 0 : i64, scratch_operands = 0 : i64, tpu.core_type = #tpu.core_type<tc>, window_params = [{transform_indices = @transform_0, window_bounds = array<i64: 16, 128>}, {pipeline_mode = #tpu.pipeline_mode<synchronous>, transform_indices = @transform_1, window_bounds = array<i64: 128, 256>}, {pipeline_mode = #tpu.pipeline_mode<synchronous>, transform_indices = @transform_2, window_bounds = array<i64: 1, 256>}, {transform_indices = @transform_3, window_bounds = array<i64: 16, 128>}, {transform_indices = @transform_4, window_bounds = array<i64: 16, 384>}]} {
    %c0 = arith.constant 0 : index
    %c0_0 = arith.constant 0 : index
    %0 = vector.load %arg1[%c0, %c0_0] : memref<16x128xf32, #tpu.memory_space<vmem>>, vector<16x128xf32>
    %c0_1 = arith.constant 0 : index
    %c0_2 = arith.constant 0 : index
    %1 = vector.load %arg2[%c0_1, %c0_2] : memref<128x256xf32, #tpu.memory_space<vmem>>, vector<128x256xf32>
    %cst = arith.constant dense<0.000000e+00> : vector<16x256xf32>
    %2 = tpu.matmul %0, %1, %cst {dimension_numbers = #tpu.dot_dimension_numbers<[1], [0], [0], [1], [0, 0, 1, 1], [], []>} : vector<16x128xf32>, vector<128x256xf32>, vector<16x256xf32> -> vector<16x256xf32>
    %c0_3 = arith.constant 0 : index
    %c0_4 = arith.constant 0 : index
    %3 = vector.load %arg3[%c0_3, %c0_4] : memref<1x256xf32, #tpu.memory_space<vmem>>, vector<1x256xf32>
    %4 = vector.broadcast %3 : vector<1x256xf32> to vector<16x256xf32>
    %5 = arith.addf %2, %4 : vector<16x256xf32>
    %cst_5 = arith.constant 0.000000e+00 : f32
    %6 = vector.broadcast %cst_5 : f32 to vector<16x256xf32>
    %7 = arith.maximumf %5, %6 : vector<16x256xf32>
    %8 = vector.extract_strided_slice %7 {offsets = [0, 0], sizes = [16, 128], strides = [1, 1]} : vector<16x256xf32> to vector<16x128xf32>
    %9 = vector.extract_strided_slice %7 {offsets = [0, 128], sizes = [16, 128], strides = [1, 1]} : vector<16x256xf32> to vector<16x128xf32>
    %cst_6 = arith.constant 5.000000e-01 : f32
    %10 = vector.broadcast %cst_6 : f32 to vector<16x128xf32>
    %11 = arith.mulf %10, %9 : vector<16x128xf32>
    %12 = math.exp %11 : vector<16x128xf32>
    %c0_7 = arith.constant 0 : index
    %c0_8 = arith.constant 0 : index
    %13 = vector.load %arg4[%c0_7, %c0_8] : memref<16x128xf32, #tpu.memory_space<vmem>>, vector<16x128xf32>
    %14 = arith.mulf %13, %12 : vector<16x128xf32>
    %15 = arith.addf %14, %8 : vector<16x128xf32>
    %16 = tpu.concatenate %15, %8, %9 in 1 : vector<16x128xf32>, vector<16x128xf32>, vector<16x128xf32> -> vector<16x384xf32>
    %c0_9 = arith.constant 0 : index
    %c0_10 = arith.constant 0 : index
    %17 = vector.load %arg5[%c0_9, %c0_10] : memref<16x384xf32, #tpu.memory_space<vmem>>, vector<16x384xf32>
    tpu.vector_store %arg5[%c0_9, %c0_10], %16 {strides = array<i32>} : memref<16x384xf32, #tpu.memory_space<vmem>>, vector<16x384xf32>,
    return
  }
  func.func @transform_0(%arg0: i32) -> (i32, i32) {
    %c0_i32 = arith.constant 0 : i32
    %c0_i32_0 = arith.constant 0 : i32
    return %arg0, %c0_i32 : i32, i32
  }
  func.func @transform_1(%arg0: i32) -> (i32, i32) {
    %c0_i32 = arith.constant 0 : i32
    %c0_i32_0 = arith.constant 0 : i32
    %c0_i32_1 = arith.constant 0 : i32
    return %c0_i32, %c0_i32_0 : i32, i32
  }
  func.func @transform_2(%arg0: i32) -> (i32, i32) {
    %c0_i32 = arith.constant 0 : i32
    %c0_i32_0 = arith.constant 0 : i32
    %c0_i32_1 = arith.constant 0 : i32
    return %c0_i32, %c0_i32_0 : i32, i32
  }
  func.func @transform_3(%arg0: i32) -> (i32, i32) {
    %c0_i32 = arith.constant 0 : i32
    %c0_i32_0 = arith.constant 0 : i32
    return %arg0, %c0_i32 : i32, i32
  }
  func.func @transform_4(%arg0: i32) -> (i32, i32) {
    %c0_i32 = arith.constant 0 : i32
    %c0_i32_0 = arith.constant 0 : i32
    return %arg0, %c0_i32 : i32, i32
  }
}

</mosaic_0001>

<llo_original>
// kernel: tpu_custom_call.1
$region0: #{tpu_custom_call.1}
  #allocation0 [shape = 'u32[]', space=smem, size = 0x4, offset = 0x4, fixed_abs, tag = 'smem constant byte address 0x4 - core index']
  #allocation1 [shape = 'u32[72,128]{1,0:T(1,128)}', space=vmem, size = 0x9000, scoped, tag = 'internal scratch']
  %s0 = inlined_call_operand.hbm [shape: f32[32,128], index: 0, kind: input, shape index: {}]
  %s1 = inlined_call_operand.hbm [shape: f32[128,256], index: 1, kind: input, shape index: {}]
  %s2 = inlined_call_operand.hbm [shape: f32[1,256], index: 2, kind: input, shape index: {}]
  %s3 = inlined_call_operand.hbm [shape: f32[32,128], index: 3, kind: input, shape index: {}]
  %s4 = inlined_call_operand.hbm [shape: f32[32,384], index: 4, kind: output, shape index: {}]
  %s5 = sld [smem:[#allocation0]]
  $region65: #{tpu_custom_call.1} parent=0
    _
  %s7 = ssub.s32 1, %s5
  %s8 = scalar_select 0, %s7, %s5
  $region1: #{tpu_custom_call.1} parent=0
    #allocation2 [shape = 'u8[16384]{0}', space=vmem, size = 0x4000, scoped, tag = 'input window, operand 0']
    #allocation3 [shape = 's32[2]{0}', space=sflag, size = 0x8, scoped, tag = 'scoped memory for tpu_custom_call.1']
    #allocation4 [shape = 's32[2]{0}', space=sflag, size = 0x8, scoped, tag = 'scoped memory for tpu_custom_call.1']
    #allocation5 [shape = 'u8[131072]{0}', space=vmem, size = 0x20000, scoped, tag = 'input window, operand 1, single buffered']
    #allocation6 [shape = 's32[1]{0}', space=sflag, size = 0x4, scoped, tag = 'scoped memory for tpu_custom_call.1']
    #allocation7 [shape = 'u8[1024]{0}', space=vmem, size = 0x400, scoped, tag = 'input window, operand 2, single buffered']
    #allocation8 [shape = 'u8[16384]{0}', space=vmem, size = 0x4000, scoped, tag = 'input window, operand 3']
    #allocation9 [shape = 's32[2]{0}', space=sflag, size = 0x8, scoped, tag = 'scoped memory for tpu_custom_call.1']
    #allocation10 [shape = 'u8[49152]{0}', space=vmem, size = 0xc000, scoped, tag = 'output window, operand 0']
    %9 = vsyncpa [#allocation3], 0
    %s10 = scalar_lea.sflag [#allocation3], 1
    %11 = vsyncpa %s10, 0
    %12 = vsyncpa [#allocation6], 0
    %13 = vsyncpa [#allocation9], 0
    %s14 = scalar_lea.sflag [#allocation9], 1
    %15 = vsyncpa %s14, 0
    %16 = vsyncpa [#allocation4], 0
    %s17 = scalar_lea.sflag [#allocation4], 1
    %18 = vsyncpa %s17, 0
    loop: start=0, step=1, limit=4
    $region2: #{tpu_custom_call.1} parent=1 // loop_pre_header
      _
    $region3: #{tpu_custom_call.1} parent=1 // loop_header
      %s20 = sphi 0, %s24
      %p21 = scmp.ge.s32.totalorder %s20, 4
      %s30 = sphi 0, %s32
      %s33 = sphi 0, %s30
      %s34 = sphi 0, %s33
      %s50 = sphi 0, %s34
      %s54 = sphi 0, %s54
      %s56 = sphi 0, %s54
      %s57 = sphi 0, %s56
      %s71 = sphi 0, %s57
      %s75 = sphi 0, %s75
      %s77 = sphi 0, %s75
      %s78 = sphi 0, %s77
      %s92 = sphi 0, %s78
      %s98 = sphi 0, %s100
      %s101 = sphi 0, %s98
      %s102 = sphi 0, %s101
      %s118 = sphi 0, %s102
      %s124 = sphi 0, %s126
      %s127 = sphi 0, %s124
      %s128 = sphi 0, %s127
      %s144 = sphi 0, %s128
    $region4: #{tpu_custom_call.1} parent=1 // loop_header_branch
      %23 = sbr.rel (%p21) target = $region8
    $region5: #{tpu_custom_call.1} parent=1 // loop_body
      %s25 = ssub.s32 %s20, 1
      %s26 = ssub.s32 %s20, 2
      %s27 = sadd.s32 %s20, 1
      %s28 = ssub.s32 %s20, %s27
      %p29 = scmp.eq.s32.totalorder %s28, 0
      %s31 = sadd.s32 %s30, 1
      %s32 = scalar_select %p29, %s30, %s31
      %p35 = pneg %p29
      %p36 = scmp.eq.s32.totalorder %s20, 1
      %p37 = por %p35, %p36
      %p38 = scmp.ne.s32.totalorder %s30, %s33
      %p39 = scmp.eq.s32.totalorder %s20, 0
      %p40 = por %p38, %p39
      %p41 = scmp.ne.s32.totalorder %s30, %s33
      %p42 = scmp.eq.s32.totalorder %s25, 1
      %p43 = por %p41, %p42
      %p44 = scmp.ne.s32.totalorder %s33, %s34
      %p45 = scmp.eq.s32.totalorder %s25, 0
      %p46 = por %p44, %p45
      %p47 = scmp.ne.s32.totalorder %s33, %s34
      %p48 = scmp.eq.s32.totalorder %s26, 1
      %p49 = por %p47, %p48
      %p51 = scmp.ne.s32.totalorder %s34, %s50
      %p52 = scmp.eq.s32.totalorder %s26, 0
      %p53 = por %p51, %p52
      %s55 = sadd.s32 %s54, 1
      %p58 = scmp.eq.s32.totalorder %s20, 1
      %p59 = scmp.ne.s32.totalorder %s54, %s56
      %p60 = scmp.eq.s32.totalorder %s20, 0
      %p61 = por %p59, %p60
      %p62 = scmp.ne.s32.totalorder %s54, %s56
      %p63 = scmp.eq.s32.totalorder %s25, 1
      %p64 = por %p62, %p63
      %p65 = scmp.ne.s32.totalorder %s56, %s57
      %p66 = scmp.eq.s32.totalorder %s25, 0
      %p67 = por %p65, %p66
      %p68 = scmp.ne.s32.totalorder %s56, %s57
      %p69 = scmp.eq.s32.totalorder %s26, 1
      %p70 = por %p68, %p69
      %p72 = scmp.ne.s32.totalorder %s57, %s71
      %p73 = scmp.eq.s32.totalorder %s26, 0
      %p74 = por %p72, %p73
      %s76 = sadd.s32 %s75, 1
      %p79 = scmp.eq.s32.totalorder %s20, 1
      %p80 = scmp.ne.s32.totalorder %s75, %s77
      %p81 = scmp.eq.s32.totalorder %s20, 0
      %p82 = por %p80, %p81
      %p83 = scmp.ne.s32.totalorder %s75, %s77
      %p84 = scmp.eq.s32.totalorder %s25, 1
      %p85 = por %p83, %p84
      %p86 = scmp.ne.s32.totalorder %s77, %s78
      %p87 = scmp.eq.s32.totalorder %s25, 0
      %p88 = por %p86, %p87
      %p89 = scmp.ne.s32.totalorder %s77, %s78
      %p90 = scmp.eq.s32.totalorder %s26, 1
      %p91 = por %p89, %p90
      %p93 = scmp.ne.s32.totalorder %s78, %s92
      %p94 = scmp.eq.s32.totalorder %s26, 0
      %p95 = por %p93, %p94
      %s96 = ssub.s32 %s20, %s27
      %p97 = scmp.eq.s32.totalorder %s96, 0
      %s99 = sadd.s32 %s98, 1
      %s100 = scalar_select %p97, %s98, %s99
      %p103 = pneg %p97
      %p104 = scmp.eq.s32.totalorder %s20, 1
      %p105 = por %p103, %p104
      %p106 = scmp.ne.s32.totalorder %s98, %s101
      %p107 = scmp.eq.s32.totalorder %s20, 0
      %p108 = por %p106, %p107
      %p109 = scmp.ne.s32.totalorder %s98, %s101
      %p110 = scmp.eq.s32.totalorder %s25, 1
      %p111 = por %p109, %p110
      %p112 = scmp.ne.s32.totalorder %s101, %s102
      %p113 = scmp.eq.s32.totalorder %s25, 0
      %p114 = por %p112, %p113
      %p115 = scmp.ne.s32.totalorder %s101, %s102
      %p116 = scmp.eq.s32.totalorder %s26, 1
      %p117 = por %p115, %p116
      %p119 = scmp.ne.s32.totalorder %s102, %s118
      %p120 = scmp.eq.s32.totalorder %s26, 0
      %p121 = por %p119, %p120
      %s122 = ssub.s32 %s20, %s27
      %p123 = scmp.eq.s32.totalorder %s122, 0
      %s125 = sadd.s32 %s124, 1
      %s126 = scalar_select %p123, %s124, %s125
      %p129 = pneg %p123
      %p130 = scmp.eq.s32.totalorder %s20, 1
      %p131 = por %p129, %p130
      %p132 = scmp.ne.s32.totalorder %s124, %s127
      %p133 = scmp.eq.s32.totalorder %s20, 0
      %p134 = por %p132, %p133
      %p135 = scmp.ne.s32.totalorder %s124, %s127
      %p136 = scmp.eq.s32.totalorder %s25, 1
      %p137 = por %p135, %p136
      %p138 = scmp.ne.s32.totalorder %s127, %s128
      %p139 = scmp.eq.s32.totalorder %s25, 0
      %p140 = por %p138, %p139
      %p141 = scmp.ne.s32.totalorder %s127, %s128
      %p142 = scmp.eq.s32.totalorder %s26, 1
      %p143 = por %p141, %p142
      %p145 = scmp.ne.s32.totalorder %s128, %s144
      %p146 = scmp.eq.s32.totalorder %s26, 0
      %p147 = por %p145, %p146
      %p148 = scmp.le.s32.totalorder 1, %s20
      %p149 = scmp.lt.s32.totalorder %s20, 3
      %p150 = pnand %p148, %p149
      %p151 = pneg %p150
      // Predicated region
      $region9: #{tpu_custom_call.1} parent=5 // pred_check
        _
      $region10: #{tpu_custom_call.1} parent=5 // pred_check_branch
        %153 = sbr.rel (%p150) target = $region12
      $region11: #{tpu_custom_call.1} parent=5 // pred_region
        %s154 = ssub.s32 %s20, 1
        // Predicated region
        $region13: #{tpu_custom_call.1} parent=11 // pred_check
          %p155 = pneg %p67
        $region14: #{tpu_custom_call.1} parent=11 // pred_check_branch
          %157 = sbr.rel (%p155) target = $region16
        $region15: #{tpu_custom_call.1} parent=11 // pred_region
          %159 = vsyncadd [#allocation6], 0
          %s160 = sshll.u32 %s1, 4
          %s161 = int_to_ptr.hbm [resolvable:$true] %s160
          %s162 = sshll.u32 [#allocation5], 4
          %s163 = int_to_ptr.vmem [resolvable:$true] %s162
          %168 = dma.hbm_to_vmem [thread:$0]  %s161, 4096, %s163, [#allocation6], 256, 256, 16
        $region16: #{tpu_custom_call.1} parent=11 // pred_fallthru
          _
        // Predicated region
        $region17: #{tpu_custom_call.1} parent=11 // pred_check
          %p169 = pneg %p88
        $region18: #{tpu_custom_call.1} parent=11 // pred_check_branch
          %171 = sbr.rel (%p169) target = $region20
        $region19: #{tpu_custom_call.1} parent=11 // pred_region
          %173 = vsyncadd [#allocation6], 0
          %s175 = sshll.u32 %s2, 4
          %s176 = int_to_ptr.hbm [resolvable:$true] %s175
          %s177 = sshll.u32 [#allocation7], 4
          %s178 = int_to_ptr.vmem [resolvable:$true] %s177
          %180 = dma.hbm_to_vmem [thread:$0]  %s176, 32, %s178, [#allocation6]
        $region20: #{tpu_custom_call.1} parent=11 // pred_fallthru
          _
      $region12: #{tpu_custom_call.1} parent=5 // pred_fallthru
        _
      %p181 = scmp.lt.s32.totalorder %s20, 2
      // Predicated region
      $region21: #{tpu_custom_call.1} parent=5 // pred_check
        %p182 = pneg %p181
      $region22: #{tpu_custom_call.1} parent=5 // pred_check_branch
        %184 = sbr.rel (%p182) target = $region24
      $region23: #{tpu_custom_call.1} parent=5 // pred_region
        // Predicated region
        $region25: #{tpu_custom_call.1} parent=23 // pred_check
          %p185 = pneg %p40
        $region26: #{tpu_custom_call.1} parent=23 // pred_check_branch
          %187 = sbr.rel (%p185) target = $region28
        $region27: #{tpu_custom_call.1} parent=23 // pred_region
          %s188 = sand.u32 %s30, 1
          %s189 = scalar_lea.sflag [#allocation3], %s188
          %s190 = sand.u32 %s30, 1
          %s191 = smul.addr %s190, 16
          %s192 = scalar_lea.vmem [#allocation2], %s191
          %s193 = smul.u32 2, %s20
          %195 = vsyncadd %s189, 0
          %s196 = smul.addr %s193, 8
          %s197 = scalar_lea.hbm %s0, %s196
          %s198 = sshll.u32 %s197, 4
          %s199 = int_to_ptr.hbm [resolvable:$true] %s198
          %s200 = sshll.u32 %s192, 4
          %s201 = int_to_ptr.vmem [resolvable:$true] %s200
          %206 = dma.hbm_to_vmem [thread:$0]  %s199, 256, %s201, %s189, 128, 128, 8
        $region28: #{tpu_custom_call.1} parent=23 // pred_fallthru
          _
        // Predicated region
        $region29: #{tpu_custom_call.1} parent=23 // pred_check
          %p207 = pneg %p108
        $region30: #{tpu_custom_call.1} parent=23 // pred_check_branch
          %209 = sbr.rel (%p207) target = $region32
        $region31: #{tpu_custom_call.1} parent=23 // pred_region
          %s210 = sand.u32 %s98, 1
          %s211 = scalar_lea.sflag [#allocation9], %s210
          %s212 = sand.u32 %s98, 1
          %s213 = smul.addr %s212, 16
          %s214 = scalar_lea.vmem [#allocation8], %s213
          %s215 = smul.u32 2, %s20
          %217 = vsyncadd %s211, 0
          %s218 = smul.addr %s215, 8
          %s219 = scalar_lea.hbm %s3, %s218
          %s220 = sshll.u32 %s219, 4
          %s221 = int_to_ptr.hbm [resolvable:$true] %s220
          %s222 = sshll.u32 %s214, 4
          %s223 = int_to_ptr.vmem [resolvable:$true] %s222
          %228 = dma.hbm_to_vmem [thread:$0]  %s221, 256, %s223, %s211, 128, 128, 8
        $region32: #{tpu_custom_call.1} parent=23 // pred_fallthru
          _
      $region24: #{tpu_custom_call.1} parent=5 // pred_fallthru
        _
      %p229 = scmp.le.s32.totalorder 1, %s20
      %p230 = scmp.lt.s32.totalorder %s20, 3
      %p231 = pnand %p229, %p230
      %p232 = pneg %p231
      // Predicated region
      $region33: #{tpu_custom_call.1} parent=5 // pred_check
        _
      $region34: #{tpu_custom_call.1} parent=5 // pred_check_branch
        %234 = sbr.rel (%p231) target = $region36
      $region35: #{tpu_custom_call.1} parent=5 // pred_region
        %s235 = ssub.s32 %s20, 1
        %s236 = sand.u32 %s33, 1
        %s237 = scalar_lea.sflag [#allocation3], %s236
        %s238 = sand.u32 %s33, 1
        %s239 = smul.addr %s238, 16
        %s240 = scalar_lea.vmem [#allocation2], %s239
        // Predicated region
        $region37: #{tpu_custom_call.1} parent=35 // pred_check
          %p241 = pneg %p46
        $region38: #{tpu_custom_call.1} parent=35 // pred_check_branch
          %243 = sbr.rel (%p241) target = $region40
        $region39: #{tpu_custom_call.1} parent=35 // pred_region
          %245 = dma.done %s237, 256
        $region40: #{tpu_custom_call.1} parent=35 // pred_fallthru
          _
        // Predicated region
        $region41: #{tpu_custom_call.1} parent=35 // pred_check
          %p246 = pneg %p67
        $region42: #{tpu_custom_call.1} parent=35 // pred_check_branch
          %248 = sbr.rel (%p246) target = $region44
        $region43: #{tpu_custom_call.1} parent=35 // pred_region
          %250 = dma.done [#allocation6], 4096
        $region44: #{tpu_custom_call.1} parent=35 // pred_fallthru
          _
        // Predicated region
        $region45: #{tpu_custom_call.1} parent=35 // pred_check
          %p251 = pneg %p88
        $region46: #{tpu_custom_call.1} parent=35 // pred_check_branch
          %253 = sbr.rel (%p251) target = $region48
        $region47: #{tpu_custom_call.1} parent=35 // pred_region
          %255 = dma.done [#allocation6], 32
        $region48: #{tpu_custom_call.1} parent=35 // pred_fallthru
          _
        %s256 = sand.u32 %s101, 1
        %s257 = scalar_lea.sflag [#allocation9], %s256
        %s258 = sand.u32 %s101, 1
        %s259 = smul.addr %s258, 16
        %s260 = scalar_lea.vmem [#allocation8], %s259
        // Predicated region
        $region49: #{tpu_custom_call.1} parent=35 // pred_check
          %p261 = pneg %p114
        $region50: #{tpu_custom_call.1} parent=35 // pred_check_branch
          %263 = sbr.rel (%p261) target = $region52
        $region51: #{tpu_custom_call.1} parent=35 // pred_region
          %265 = dma.done %s257, 256
        $region52: #{tpu_custom_call.1} parent=35 // pred_fallthru
          _
        %s266 = sand.u32 %s33, 1
        %s267 = scalar_lea.sflag [#allocation3], %s266
        %s268 = sand.u32 %s33, 1
        %s269 = smul.addr %s268, 16
        %s270 = scalar_lea.vmem [#allocation2], %s269
        %p271 = pneg %p46
        %p272 = pneg %p43
        %p273 = pneg %p67
        %p274 = pneg %p64
        %p275 = pneg %p88
        %p276 = pneg %p85
        %s277 = sand.u32 %s101, 1
        %s278 = scalar_lea.sflag [#allocation9], %s277
        %s279 = sand.u32 %s101, 1
        %s280 = smul.addr %s279, 16
        %s281 = scalar_lea.vmem [#allocation8], %s280
        %p282 = pneg %p114
        %p283 = pneg %p111
        %p284 = pneg %p140
        %p285 = pneg %p137
        %s286 = sand.u32 %s127, 1
        %s287 = scalar_lea.sflag [#allocation4], %s286
        %s288 = sand.u32 %s127, 1
        %s289 = smul.addr %s288, 48
        %s290 = scalar_lea.vmem [#allocation10], %s289
        %s291 = smul.u32 2, %s25
        %s292 = smul.u32 2, %s25
        %s293 = smul.u32 2, %s25
        %v294 = vld [vmem:[%s240] sm:$0xff]
        %v295 = vld [vmem:[%s240 + $0x8] sm:$0xff]
        %v296 = vld [vmem:[#allocation5] sm:$0xff]
        %v297 = vld [vmem:[#allocation5 + $0x8] sm:$0xff]
        %v298 = vld [vmem:[#allocation5 + $0x10] sm:$0xff]
        %v299 = vld [vmem:[#allocation5 + $0x18] sm:$0xff]
        %v300 = vld [vmem:[#allocation5 + $0x20] sm:$0xff]
        %v301 = vld [vmem:[#allocation5 + $0x28] sm:$0xff]
        %v302 = vld [vmem:[#allocation5 + $0x30] sm:$0xff]
        %v303 = vld [vmem:[#allocation5 + $0x38] sm:$0xff]
        %v304 = vld [vmem:[#allocation5 + $0x40] sm:$0xff]
        %v305 = vld [vmem:[#allocation5 + $0x48] sm:$0xff]
        %v306 = vld [vmem:[#allocation5 + $0x50] sm:$0xff]
        %v307 = vld [vmem:[#allocation5 + $0x58] sm:$0xff]
        %v308 = vld [vmem:[#allocation5 + $0x60] sm:$0xff]
        %v309 = vld [vmem:[#allocation5 + $0x68] sm:$0xff]
        %v310 = vld [vmem:[#allocation5 + $0x70] sm:$0xff]
        %v311 = vld [vmem:[#allocation5 + $0x78] sm:$0xff]
        %v312 = vld [vmem:[#allocation5 + $0x80] sm:$0xff]
        %v313 = vld [vmem:[#allocation5 + $0x88] sm:$0xff]
        %v314 = vld [vmem:[#allocation5 + $0x90] sm:$0xff]
        %v315 = vld [vmem:[#allocation5 + $0x98] sm:$0xff]
        %v316 = vld [vmem:[#allocation5 + $0xa0] sm:$0xff]
        %v317 = vld [vmem:[#allocation5 + $0xa8] sm:$0xff]
        %v318 = vld [vmem:[#allocation5 + $0xb0] sm:$0xff]
        %v319 = vld [vmem:[#allocation5 + $0xb8] sm:$0xff]
        %v320 = vld [vmem:[#allocation5 + $0xc0] sm:$0xff]
        %v321 = vld [vmem:[#allocation5 + $0xc8] sm:$0xff]
        %v322 = vld [vmem:[#allocation5 + $0xd0] sm:$0xff]
        %v323 = vld [vmem:[#allocation5 + $0xd8] sm:$0xff]
        %v324 = vld [vmem:[#allocation5 + $0xe0] sm:$0xff]
        %v325 = vld [vmem:[#allocation5 + $0xe8] sm:$0xff]
        %v326 = vld [vmem:[#allocation5 + $0xf0] sm:$0xff]
        %v327 = vld [vmem:[#allocation5 + $0xf8] sm:$0xff]
        %v328 = vld [vmem:[#allocation7] sm:$0x3]
        %v330 = vperm.slane %v328, 0
        %v331 = vperm.slane %v328, 1
        %334 = vmatpush.msra.mxu0 %v326
        %335 = vmatpush.msra.mxu0 %v324
        %336 = vmatpush.msra.mxu0 %v322
        %337 = vmatpush.msra.mxu0 %v320
        %338 = vmatpush.msra.mxu0 %v318
        %339 = vmatpush.msra.mxu0 %v316
        %340 = vmatpush.msra.mxu0 %v314
        %341 = vmatpush.msra.mxu0 %v312
        %342 = vmatpush.msra.mxu0 %v310
        %343 = vmatpush.msra.mxu0 %v308
        %344 = vmatpush.msra.mxu0 %v306
        %345 = vmatpush.msra.mxu0 %v304
        %346 = vmatpush.msra.mxu0 %v302
        %347 = vmatpush.msra.mxu0 %v300
        %348 = vmatpush.msra.mxu0 %v298
        %349 = vmatpush.msra.mxu0 %v296
        %350 = vmatmul.f32.gmra.mxu0 %v294
        %v351 = vpop.f32.mrf.mxu0
        %v352 = vadd.f32 %v330, %v351
        %353 = vmatmul.f32.gmra.mxu0 %v295
        %v354 = vpop.f32.mrf.mxu0
        %v355 = vadd.f32 %v330, %v354
        %356 = vdwg.mxu0
        %357 = vmatpush.msra.mxu0 %v327
        %358 = vmatpush.msra.mxu0 %v325
        %359 = vmatpush.msra.mxu0 %v323
        %360 = vmatpush.msra.mxu0 %v321
        %361 = vmatpush.msra.mxu0 %v319
        %362 = vmatpush.msra.mxu0 %v317
        %363 = vmatpush.msra.mxu0 %v315
        %364 = vmatpush.msra.mxu0 %v313
        %365 = vmatpush.msra.mxu0 %v311
        %366 = vmatpush.msra.mxu0 %v309
        %367 = vmatpush.msra.mxu0 %v307
        %368 = vmatpush.msra.mxu0 %v305
        %369 = vmatpush.msra.mxu0 %v303
        %370 = vmatpush.msra.mxu0 %v301
        %371 = vmatpush.msra.mxu0 %v299
        %372 = vmatpush.msra.mxu0 %v297
        %373 = vmatmul.f32.gmra.mxu0 %v294
        %v374 = vpop.f32.mrf.mxu0
        %v375 = vadd.f32 %v331, %v374
        %376 = vmatmul.f32.gmra.mxu0 %v295
        %v377 = vpop.f32.mrf.mxu0
        %v378 = vadd.f32 %v331, %v377
        %379 = vdwg.mxu0
        %v380 = vmax.f32 %v352, 0.0
        %v381 = vmax.f32 %v375, 0.0
        %v382 = vmax.f32 %v355, 0.0
        %v383 = vmax.f32 %v378, 0.0
        %v384 = vmul.f32 %v381, 0.5
        %v385 = vmul.f32 %v383, 0.5
        %v386 = vmul.f32 %v384, 1.442695
        %v387 = vpow.pop %v386
        %v388 = vmul.f32 %v385, 1.442695
        %v389 = vpow.pop %v388
        %v390 = vld [vmem:[%s260] sm:$0xff]
        %v391 = vld [vmem:[%s260 + $0x8] sm:$0xff]
        %v392 = vmul.f32 %v390, %v387
        %v393 = vmul.f32 %v391, %v389
        %v394 = vadd.f32 %v392, %v380
        %v395 = vadd.f32 %v393, %v382
        %396 = vst [vmem:[%s290] sm:$0xff] %v394
        %397 = vst [vmem:[%s290 + $0x8] sm:$0xff] %v380
        %398 = vst [vmem:[%s290 + $0x10] sm:$0xff] %v381
        %399 = vst [vmem:[%s290 + $0x18] sm:$0xff] %v395
        %400 = vst [vmem:[%s290 + $0x20] sm:$0xff] %v382
        %401 = vst [vmem:[%s290 + $0x28] sm:$0xff] %v383
        %s402 = sand.u32 %s127, 1
        %s403 = scalar_lea.sflag [#allocation4], %s402
        %s404 = sand.u32 %s127, 1
        %s405 = smul.addr %s404, 48
        %s406 = scalar_lea.vmem [#allocation10], %s405
        // Predicated region
        $region53: #{tpu_custom_call.1} parent=35 // pred_check
          %p407 = pneg %p137
        $region54: #{tpu_custom_call.1} parent=35 // pred_check_branch
          %409 = sbr.rel (%p407) target = $region56
        $region55: #{tpu_custom_call.1} parent=35 // pred_region
          %s410 = smul.u32 2, %s25
          %412 = vsyncadd %s403, 0
          %s413 = smul.addr %s410, 3
          %s414 = smul.addr %s413, 8
          %s415 = scalar_lea.hbm %s4, %s414
          %s416 = sshll.u32 %s406, 4
          %s417 = int_to_ptr.vmem [resolvable:$true] %s416
          %s418 = sshll.u32 %s415, 4
          %s419 = int_to_ptr.hbm [resolvable:$true] %s418
          %424 = dma.vmem_to_hbm [thread:$0]  %s417, 768, %s419, %s403, 384, 384, 24
        $region56: #{tpu_custom_call.1} parent=35 // pred_fallthru
          _
      $region36: #{tpu_custom_call.1} parent=5 // pred_fallthru
        _
      %p425 = scmp.le.s32.totalorder 2, %s20
      // Predicated region
      $region57: #{tpu_custom_call.1} parent=5 // pred_check
        %p426 = pneg %p425
      $region58: #{tpu_custom_call.1} parent=5 // pred_check_branch
        %428 = sbr.rel (%p426) target = $region60
      $region59: #{tpu_custom_call.1} parent=5 // pred_region
        %s429 = ssub.s32 %s20, 2
        // Predicated region
        $region61: #{tpu_custom_call.1} parent=59 // pred_check
          %p430 = pneg %p143
        $region62: #{tpu_custom_call.1} parent=59 // pred_check_branch
          %432 = sbr.rel (%p430) target = $region64
        $region63: #{tpu_custom_call.1} parent=59 // pred_region
          %s433 = sand.u32 %s128, 1
          %s434 = scalar_lea.sflag [#allocation4], %s433
          %s435 = sand.u32 %s128, 1
          %s436 = smul.addr %s435, 48
          %s437 = scalar_lea.vmem [#allocation10], %s436
          %439 = dma.done %s434, 768
        $region64: #{tpu_custom_call.1} parent=59 // pred_fallthru
          _
      $region60: #{tpu_custom_call.1} parent=5 // pred_fallthru
        _
    $region6: #{tpu_custom_call.1} parent=1 // loop_footer
      %s24 = sadd.s32 1, %s20
    $region7: #{tpu_custom_call.1} parent=1 // loop_footer_branch
      %19 = sbr.rel target = $region3
    $region8: #{tpu_custom_call.1} parent=1 // loop_exit
      _
    %440 = vsyncpa [#allocation3], 1
    %s441 = scalar_lea.sflag [#allocation3], 1
    %442 = vsyncpa %s441, 1
    %443 = vsyncpa [#allocation6], 1
    %444 = vsyncpa [#allocation9], 1
    %s445 = scalar_lea.sflag [#allocation9], 1
    %446 = vsyncpa %s445, 1
    %447 = vsyncpa [#allocation4], 1
    %s448 = scalar_lea.sflag [#allocation4], 1
    %449 = vsyncpa %s448, 1

// kernel: tpu_custom_call.1
$region0: #{tpu_custom_call.1}
  #allocation0 [shape = 'u32[]', space=smem, size = 0x4, offset = 0x4, fixed_abs, tag = 'smem constant byte address 0x4 - core index']
  #allocation1 [shape = 'u32[72,128]{1,0:T(1,128)}', space=vmem, size = 0x9000, scoped, tag = 'internal scratch']
  %s0 = inlined_call_operand.hbm [shape: f32[32,128], index: 0, kind: input, shape index: {}]
  %s1 = inlined_call_operand.hbm [shape: f32[128,256], index: 1, kind: input, shape index: {}]
  %s2 = inlined_call_operand.hbm [shape: f32[1,256], index: 2, kind: input, shape index: {}]
  %s3 = inlined_call_operand.hbm [shape: f32[32,128], index: 3, kind: input, shape index: {}]
  %s4 = inlined_call_operand.hbm [shape: f32[32,384], index: 4, kind: output, shape index: {}]
  %s5 = sld [smem:[#allocation0]]
  $region65: #{tpu_custom_call.1} parent=0
    _
  %s7 = ssub.s32 1, %s5
  %s8 = scalar_select 0, %s7, %s5
  $region1: #{tpu_custom_call.1} parent=0
    #allocation2 [shape = 'u8[16384]{0}', space=vmem, size = 0x4000, scoped, tag = 'input window, operand 0']
    #allocation3 [shape = 's32[2]{0}', space=sflag, size = 0x8, scoped, tag = 'scoped memory for tpu_custom_call.1']
    #allocation4 [shape = 's32[2]{0}', space=sflag, size = 0x8, scoped, tag = 'scoped memory for tpu_custom_call.1']
    #allocation5 [shape = 'u8[131072]{0}', space=vmem, size = 0x20000, scoped, tag = 'input window, operand 1, single buffered']
    #allocation6 [shape = 's32[1]{0}', space=sflag, size = 0x4, scoped, tag = 'scoped memory for tpu_custom_call.1']
    #allocation7 [shape = 'u8[1024]{0}', space=vmem, size = 0x400, scoped, tag = 'input window, operand 2, single buffered']
    #allocation8 [shape = 'u8[16384]{0}', space=vmem, size = 0x4000, scoped, tag = 'input window, operand 3']
    #allocation9 [shape = 's32[2]{0}', space=sflag, size = 0x8, scoped, tag = 'scoped memory for tpu_custom_call.1']
    #allocation10 [shape = 'u8[49152]{0}', space=vmem, size = 0xc000, scoped, tag = 'output window, operand 0']
    %9 = vsyncpa [#allocation3], 0
    %s10 = scalar_lea.sflag [#allocation3], 1
    %11 = vsyncpa %s10, 0
    %12 = vsyncpa [#allocation6], 0
    %13 = vsyncpa [#allocation9], 0
    %s14 = scalar_lea.sflag [#allocation9], 1
    %15 = vsyncpa %s14, 0
    %16 = vsyncpa [#allocation4], 0
    %s17 = scalar_lea.sflag [#allocation4], 1
    %18 = vsyncpa %s17, 0
    loop: start=0, step=1, limit=4
    $region2: #{tpu_custom_call.1} parent=1 // loop_pre_header
      _
    $region3: #{tpu_custom_call.1} parent=1 // loop_header
      %s20 = sphi 0, %s24
      %p21 = scmp.ge.s32.totalorder %s20, 4
      %s30 = sphi 0, %s32
      %s33 = sphi 0, %s30
      %s34 = sphi 0, %s33
      %s50 = sphi 0, %s34
      %s54 = sphi 0, %s54
      %s56 = sphi 0, %s54
      %s57 = sphi 0, %s56
      %s71 = sphi 0, %s57
      %s75 = sphi 0, %s75
      %s77 = sphi 0, %s75
      %s78 = sphi 0, %s77
      %s92 = sphi 0, %s78
      %s98 = sphi 0, %s100
      %s101 = sphi 0, %s98
      %s102 = sphi 0, %s101
      %s118 = sphi 0, %s102
      %s124 = sphi 0, %s126
      %s127 = sphi 0, %s124
      %s128 = sphi 0, %s127
      %s144 = sphi 0, %s128
    $region4: #{tpu_custom_call.1} parent=1 // loop_header_branch
      %23 = sbr.rel (%p21) target = $region8
    $region5: #{tpu_custom_call.1} parent=1 // loop_body
      %s25 = ssub.s32 %s20, 1
      %s26 = ssub.s32 %s20, 2
      %s27 = sadd.s32 %s20, 1
      %s28 = ssub.s32 %s20, %s27
      %p29 = scmp.eq.s32.totalorder %s28, 0
      %s31 = sadd.s32 %s30, 1
      %s32 = scalar_select %p29, %s30, %s31
      %p35 = pneg %p29
      %p36 = scmp.eq.s32.totalorder %s20, 1
      %p37 = por %p35, %p36
      %p38 = scmp.ne.s32.totalorder %s30, %s33
      %p39 = scmp.eq.s32.totalorder %s20, 0
      %p40 = por %p38, %p39
      %p41 = scmp.ne.s32.totalorder %s30, %s33
      %p42 = scmp.eq.s32.totalorder %s25, 1
      %p43 = por %p41, %p42
      %p44 = scmp.ne.s32.totalorder %s33, %s34
      %p45 = scmp.eq.s32.totalorder %s25, 0
      %p46 = por %p44, %p45
      %p47 = scmp.ne.s32.totalorder %s33, %s34
      %p48 = scmp.eq.s32.totalorder %s26, 1
      %p49 = por %p47, %p48
      %p51 = scmp.ne.s32.totalorder %s34, %s50
      %p52 = scmp.eq.s32.totalorder %s26, 0
      %p53 = por %p51, %p52
      %s55 = sadd.s32 %s54, 1
      %p58 = scmp.eq.s32.totalorder %s20, 1
      %p59 = scmp.ne.s32.totalorder %s54, %s56
      %p60 = scmp.eq.s32.totalorder %s20, 0
      %p61 = por %p59, %p60
      %p62 = scmp.ne.s32.totalorder %s54, %s56
      %p63 = scmp.eq.s32.totalorder %s25, 1
      %p64 = por %p62, %p63
      %p65 = scmp.ne.s32.totalorder %s56, %s57
      %p66 = scmp.eq.s32.totalorder %s25, 0
      %p67 = por %p65, %p66
      %p68 = scmp.ne.s32.totalorder %s56, %s57
      %p69 = scmp.eq.s32.totalorder %s26, 1
      %p70 = por %p68, %p69
      %p72 = scmp.ne.s32.totalorder %s57, %s71
      %p73 = scmp.eq.s32.totalorder %s26, 0
      %p74 = por %p72, %p73
      %s76 = sadd.s32 %s75, 1
      %p79 = scmp.eq.s32.totalorder %s20, 1
      %p80 = scmp.ne.s32.totalorder %s75, %s77
      %p81 = scmp.eq.s32.totalorder %s20, 0
      %p82 = por %p80, %p81
      %p83 = scmp.ne.s32.totalorder %s75, %s77
      %p84 = scmp.eq.s32.totalorder %s25, 1
      %p85 = por %p83, %p84
      %p86 = scmp.ne.s32.totalorder %s77, %s78
      %p87 = scmp.eq.s32.totalorder %s25, 0
      %p88 = por %p86, %p87
      %p89 = scmp.ne.s32.totalorder %s77, %s78
      %p90 = scmp.eq.s32.totalorder %s26, 1
      %p91 = por %p89, %p90
      %p93 = scmp.ne.s32.totalorder %s78, %s92
      %p94 = scmp.eq.s32.totalorder %s26, 0
      %p95 = por %p93, %p94
      %s96 = ssub.s32 %s20, %s27
      %p97 = scmp.eq.s32.totalorder %s96, 0
      %s99 = sadd.s32 %s98, 1
      %s100 = scalar_select %p97, %s98, %s99
      %p103 = pneg %p97
      %p104 = scmp.eq.s32.totalorder %s20, 1
      %p105 = por %p103, %p104
      %p106 = scmp.ne.s32.totalorder %s98, %s101
      %p107 = scmp.eq.s32.totalorder %s20, 0
      %p108 = por %p106, %p107
      %p109 = scmp.ne.s32.totalorder %s98, %s101
      %p110 = scmp.eq.s32.totalorder %s25, 1
      %p111 = por %p109, %p110
      %p112 = scmp.ne.s32.totalorder %s101, %s102
      %p113 = scmp.eq.s32.totalorder %s25, 0
      %p114 = por %p112, %p113
      %p115 = scmp.ne.s32.totalorder %s101, %s102
      %p116 = scmp.eq.s32.totalorder %s26, 1
      %p117 = por %p115, %p116
      %p119 = scmp.ne.s32.totalorder %s102, %s118
      %p120 = scmp.eq.s32.totalorder %s26, 0
      %p121 = por %p119, %p120
      %s122 = ssub.s32 %s20, %s27
      %p123 = scmp.eq.s32.totalorder %s122, 0
      %s125 = sadd.s32 %s124, 1
      %s126 = scalar_select %p123, %s124, %s125
      %p129 = pneg %p123
      %p130 = scmp.eq.s32.totalorder %s20, 1
      %p131 = por %p129, %p130
      %p132 = scmp.ne.s32.totalorder %s124, %s127
      %p133 = scmp.eq.s32.totalorder %s20, 0
      %p134 = por %p132, %p133
      %p135 = scmp.ne.s32.totalorder %s124, %s127
      %p136 = scmp.eq.s32.totalorder %s25, 1
      %p137 = por %p135, %p136
      %p138 = scmp.ne.s32.totalorder %s127, %s128
      %p139 = scmp.eq.s32.totalorder %s25, 0
      %p140 = por %p138, %p139
      %p141 = scmp.ne.s32.totalorder %s127, %s128
      %p142 = scmp.eq.s32.totalorder %s26, 1
      %p143 = por %p141, %p142
      %p145 = scmp.ne.s32.totalorder %s128, %s144
      %p146 = scmp.eq.s32.totalorder %s26, 0
      %p147 = por %p145, %p146
      %p148 = scmp.le.s32.totalorder 1, %s20
      %p149 = scmp.lt.s32.totalorder %s20, 3
      %p150 = pnand %p148, %p149
      %p151 = pneg %p150
      // Predicated region
      $region9: #{tpu_custom_call.1} parent=5 // pred_check
        _
      $region10: #{tpu_custom_call.1} parent=5 // pred_check_branch
        %153 = sbr.rel (%p150) target = $region12
      $region11: #{tpu_custom_call.1} parent=5 // pred_region
        %s154 = ssub.s32 %s20, 1
        // Predicated region
        $region13: #{tpu_custom_call.1} parent=11 // pred_check
          %p155 = pneg %p67
        $region14: #{tpu_custom_call.1} parent=11 // pred_check_branch
          %157 = sbr.rel (%p155) target = $region16
        $region15: #{tpu_custom_call.1} parent=11 // pred_region
          %159 = vsyncadd [#allocation6], 0
          %s160 = sshll.u32 %s1, 4
          %s161 = int_to_ptr.hbm [resolvable:$true] %s160
          %s162 = sshll.u32 [#allocation5], 4
          %s163 = int_to_ptr.vmem [resolvable:$true] %s162
          %168 = dma.hbm_to_vmem [thread:$0]  %s161, 4096, %s163, [#allocation6], 256, 256, 16
        $region16: #{tpu_custom_call.1} parent=11 // pred_fallthru
          _
        // Predicated region
        $region17: #{tpu_custom_call.1} parent=11 // pred_check
          %p169 = pneg %p88
        $region18: #{tpu_custom_call.1} parent=11 // pred_check_branch
          %171 = sbr.rel (%p169) target = $region20
        $region19: #{tpu_custom_call.1} parent=11 // pred_region
          %173 = vsyncadd [#allocation6], 0
          %s175 = sshll.u32 %s2, 4
          %s176 = int_to_ptr.hbm [resolvable:$true] %s175
          %s177 = sshll.u32 [#allocation7], 4
          %s178 = int_to_ptr.vmem [resolvable:$true] %s177
          %180 = dma.hbm_to_vmem [thread:$0]  %s176, 32, %s178, [#allocation6]
        $region20: #{tpu_custom_call.1} parent=11 // pred_fallthru
          _
      $region12: #{tpu_custom_call.1} parent=5 // pred_fallthru
        _
      %p181 = scmp.lt.s32.totalorder %s20, 2
      // Predicated region
      $region21: #{tpu_custom_call.1} parent=5 // pred_check
        %p182 = pneg %p181
      $region22: #{tpu_custom_call.1} parent=5 // pred_check_branch
        %184 = sbr.rel (%p182) target = $region24
      $region23: #{tpu_custom_call.1} parent=5 // pred_region
        // Predicated region
        $region25: #{tpu_custom_call.1} parent=23 // pred_check
          %p185 = pneg %p40
        $region26: #{tpu_custom_call.1} parent=23 // pred_check_branch
          %187 = sbr.rel (%p185) target = $region28
        $region27: #{tpu_custom_call.1} parent=23 // pred_region
          %s188 = sand.u32 %s30, 1
          %s189 = scalar_lea.sflag [#allocation3], %s188
          %s190 = sand.u32 %s30, 1
          %s191 = smul.addr %s190, 16
          %s192 = scalar_lea.vmem [#allocation2], %s191
          %s193 = smul.u32 2, %s20
          %195 = vsyncadd %s189, 0
          %s196 = smul.addr %s193, 8
          %s197 = scalar_lea.hbm %s0, %s196
          %s198 = sshll.u32 %s197, 4
          %s199 = int_to_ptr.hbm [resolvable:$true] %s198
          %s200 = sshll.u32 %s192, 4
          %s201 = int_to_ptr.vmem [resolvable:$true] %s200
          %206 = dma.hbm_to_vmem [thread:$0]  %s199, 256, %s201, %s189, 128, 128, 8
        $region28: #{tpu_custom_call.1} parent=23 // pred_fallthru
          _
        // Predicated region
        $region29: #{tpu_custom_call.1} parent=23 // pred_check
          %p207 = pneg %p108
        $region30: #{tpu_custom_call.1} parent=23 // pred_check_branch
          %209 = sbr.rel (%p207) target = $region32
        $region31: #{tpu_custom_call.1} parent=23 // pred_region
          %s210 = sand.u32 %s98, 1
          %s211 = scalar_lea.sflag [#allocation9], %s210
          %s212 = sand.u32 %s98, 1
          %s213 = smul.addr %s212, 16
          %s214 = scalar_lea.vmem [#allocation8], %s213
          %s215 = smul.u32 2, %s20
          %217 = vsyncadd %s211, 0
          %s218 = smul.addr %s215, 8
          %s219 = scalar_lea.hbm %s3, %s218
          %s220 = sshll.u32 %s219, 4
          %s221 = int_to_ptr.hbm [resolvable:$true] %s220
          %s222 = sshll.u32 %s214, 4
          %s223 = int_to_ptr.vmem [resolvable:$true] %s222
          %228 = dma.hbm_to_vmem [thread:$0]  %s221, 256, %s223, %s211, 128, 128, 8
        $region32: #{tpu_custom_call.1} parent=23 // pred_fallthru
          _
      $region24: #{tpu_custom_call.1} parent=5 // pred_fallthru
        _
      %p229 = scmp.le.s32.totalorder 1, %s20
      %p230 = scmp.lt.s32.totalorder %s20, 3
      %p231 = pnand %p229, %p230
      %p232 = pneg %p231
      // Predicated region
      $region33: #{tpu_custom_call.1} parent=5 // pred_check
        _
      $region34: #{tpu_custom_call.1} parent=5 // pred_check_branch
        %234 = sbr.rel (%p231) target = $region36
      $region35: #{tpu_custom_call.1} parent=5 // pred_region
        %s235 = ssub.s32 %s20, 1
        %s236 = sand.u32 %s33, 1
        %s237 = scalar_lea.sflag [#allocation3], %s236
        %s238 = sand.u32 %s33, 1
        %s239 = smul.addr %s238, 16
        %s240 = scalar_lea.vmem [#allocation2], %s239
        // Predicated region
        $region37: #{tpu_custom_call.1} parent=35 // pred_check
          %p241 = pneg %p46
        $region38: #{tpu_custom_call.1} parent=35 // pred_check_branch
          %243 = sbr.rel (%p241) target = $region40
        $region39: #{tpu_custom_call.1} parent=35 // pred_region
          %245 = dma.done %s237, 256
        $region40: #{tpu_custom_call.1} parent=35 // pred_fallthru
          _
        // Predicated region
        $region41: #{tpu_custom_call.1} parent=35 // pred_check
          %p246 = pneg %p67
        $region42: #{tpu_custom_call.1} parent=35 // pred_check_branch
          %248 = sbr.rel (%p246) target = $region44
        $region43: #{tpu_custom_call.1} parent=35 // pred_region
          %250 = dma.done [#allocation6], 4096
        $region44: #{tpu_custom_call.1} parent=35 // pred_fallthru
          _
        // Predicated region
        $region45: #{tpu_custom_call.1} parent=35 // pred_check
          %p251 = pneg %p88
        $region46: #{tpu_custom_call.1} parent=35 // pred_check_branch
          %253 = sbr.rel (%p251) target = $region48
        $region47: #{tpu_custom_call.1} parent=35 // pred_region
          %255 = dma.done [#allocation6], 32
        $region48: #{tpu_custom_call.1} parent=35 // pred_fallthru
          _
        %s256 = sand.u32 %s101, 1
        %s257 = scalar_lea.sflag [#allocation9], %s256
        %s258 = sand.u32 %s101, 1
        %s259 = smul.addr %s258, 16
        %s260 = scalar_lea.vmem [#allocation8], %s259
        // Predicated region
        $region49: #{tpu_custom_call.1} parent=35 // pred_check
          %p261 = pneg %p114
        $region50: #{tpu_custom_call.1} parent=35 // pred_check_branch
          %263 = sbr.rel (%p261) target = $region52
        $region51: #{tpu_custom_call.1} parent=35 // pred_region
          %265 = dma.done %s257, 256
        $region52: #{tpu_custom_call.1} parent=35 // pred_fallthru
          _
        %s266 = sand.u32 %s33, 1
        %s267 = scalar_lea.sflag [#allocation3], %s266
        %s268 = sand.u32 %s33, 1
        %s269 = smul.addr %s268, 16
        %s270 = scalar_lea.vmem [#allocation2], %s269
        %p271 = pneg %p46
        %p272 = pneg %p43
        %p273 = pneg %p67
        %p274 = pneg %p64
        %p275 = pneg %p88
        %p276 = pneg %p85
        %s277 = sand.u32 %s101, 1
        %s278 = scalar_lea.sflag [#allocation9], %s277
        %s279 = sand.u32 %s101, 1
        %s280 = smul.addr %s279, 16
        %s281 = scalar_lea.vmem [#allocation8], %s280
        %p282 = pneg %p114
        %p283 = pneg %p111
        %p284 = pneg %p140
        %p285 = pneg %p137
        %s286 = sand.u32 %s127, 1
        %s287 = scalar_lea.sflag [#allocation4], %s286
        %s288 = sand.u32 %s127, 1
        %s289 = smul.addr %s288, 48
        %s290 = scalar_lea.vmem [#allocation10], %s289
        %s291 = smul.u32 2, %s25
        %s292 = smul.u32 2, %s25
        %s293 = smul.u32 2, %s25
        %v294 = vld [vmem:[%s240] sm:$0xff]
        %v295 = vld [vmem:[%s240 + $0x8] sm:$0xff]
        %v296 = vld [vmem:[#allocation5] sm:$0xff]
        %v297 = vld [vmem:[#allocation5 + $0x8] sm:$0xff]
        %v298 = vld [vmem:[#allocation5 + $0x10] sm:$0xff]
        %v299 = vld [vmem:[#allocation5 + $0x18] sm:$0xff]
        %v300 = vld [vmem:[#allocation5 + $0x20] sm:$0xff]
        %v301 = vld [vmem:[#allocation5 + $0x28] sm:$0xff]
        %v302 = vld [vmem:[#allocation5 + $0x30] sm:$0xff]
        %v303 = vld [vmem:[#allocation5 + $0x38] sm:$0xff]
        %v304 = vld [vmem:[#allocation5 + $0x40] sm:$0xff]
        %v305 = vld [vmem:[#allocation5 + $0x48] sm:$0xff]
        %v306 = vld [vmem:[#allocation5 + $0x50] sm:$0xff]
        %v307 = vld [vmem:[#allocation5 + $0x58] sm:$0xff]
        %v308 = vld [vmem:[#allocation5 + $0x60] sm:$0xff]
        %v309 = vld [vmem:[#allocation5 + $0x68] sm:$0xff]
        %v310 = vld [vmem:[#allocation5 + $0x70] sm:$0xff]
        %v311 = vld [vmem:[#allocation5 + $0x78] sm:$0xff]
        %v312 = vld [vmem:[#allocation5 + $0x80] sm:$0xff]
        %v313 = vld [vmem:[#allocation5 + $0x88] sm:$0xff]
        %v314 = vld [vmem:[#allocation5 + $0x90] sm:$0xff]
        %v315 = vld [vmem:[#allocation5 + $0x98] sm:$0xff]
        %v316 = vld [vmem:[#allocation5 + $0xa0] sm:$0xff]
        %v317 = vld [vmem:[#allocation5 + $0xa8] sm:$0xff]
        %v318 = vld [vmem:[#allocation5 + $0xb0] sm:$0xff]
        %v319 = vld [vmem:[#allocation5 + $0xb8] sm:$0xff]
        %v320 = vld [vmem:[#allocation5 + $0xc0] sm:$0xff]
        %v321 = vld [vmem:[#allocation5 + $0xc8] sm:$0xff]
        %v322 = vld [vmem:[#allocation5 + $0xd0] sm:$0xff]
        %v323 = vld [vmem:[#allocation5 + $0xd8] sm:$0xff]
        %v324 = vld [vmem:[#allocation5 + $0xe0] sm:$0xff]
        %v325 = vld [vmem:[#allocation5 + $0xe8] sm:$0xff]
        %v326 = vld [vmem:[#allocation5 + $0xf0] sm:$0xff]
        %v327 = vld [vmem:[#allocation5 + $0xf8] sm:$0xff]
        %v328 = vld [vmem:[#allocation7] sm:$0x3]
        %v330 = vperm.slane %v328, 0
        %v331 = vperm.slane %v328, 1
        %334 = vmatpush.msra.mxu0 %v326
        %335 = vmatpush.msra.mxu0 %v324
        %336 = vmatpush.msra.mxu0 %v322
        %337 = vmatpush.msra.mxu0 %v320
        %338 = vmatpush.msra.mxu0 %v318
        %339 = vmatpush.msra.mxu0 %v316
        %340 = vmatpush.msra.mxu0 %v314
        %341 = vmatpush.msra.mxu0 %v312
        %342 = vmatpush.msra.mxu0 %v310
        %343 = vmatpush.msra.mxu0 %v308
        %344 = vmatpush.msra.mxu0 %v306
        %345 = vmatpush.msra.mxu0 %v304
        %346 = vmatpush.msra.mxu0 %v302
        %347 = vmatpush.msra.mxu0 %v300
        %348 = vmatpush.msra.mxu0 %v298
        %349 = vmatpush.msra.mxu0 %v296
        %350 = vmatmul.f32.gmra.mxu0 %v294
        %v351 = vpop.f32.mrf.mxu0
        %v352 = vadd.f32 %v330, %v351
        %353 = vmatmul.f32.gmra.mxu0 %v295
        %v354 = vpop.f32.mrf.mxu0
        %v355 = vadd.f32 %v330, %v354
        %356 = vdwg.mxu0
        %357 = vmatpush.msra.mxu0 %v327
        %358 = vmatpush.msra.mxu0 %v325
        %359 = vmatpush.msra.mxu0 %v323
        %360 = vmatpush.msra.mxu0 %v321
        %361 = vmatpush.msra.mxu0 %v319
        %362 = vmatpush.msra.mxu0 %v317
        %363 = vmatpush.msra.mxu0 %v315
        %364 = vmatpush.msra.mxu0 %v313
        %365 = vmatpush.msra.mxu0 %v311
        %366 = vmatpush.msra.mxu0 %v309
        %367 = vmatpush.msra.mxu0 %v307
        %368 = vmatpush.msra.mxu0 %v305
        %369 = vmatpush.msra.mxu0 %v303
        %370 = vmatpush.msra.mxu0 %v301
        %371 = vmatpush.msra.mxu0 %v299
        %372 = vmatpush.msra.mxu0 %v297
        %373 = vmatmul.f32.gmra.mxu0 %v294
        %v374 = vpop.f32.mrf.mxu0
        %v375 = vadd.f32 %v331, %v374
        %376 = vmatmul.f32.gmra.mxu0 %v295
        %v377 = vpop.f32.mrf.mxu0
        %v378 = vadd.f32 %v331, %v377
        %379 = vdwg.mxu0
        %v380 = vmax.f32 %v352, 0.0
        %v381 = vmax.f32 %v375, 0.0
        %v382 = vmax.f32 %v355, 0.0
        %v383 = vmax.f32 %v378, 0.0
        %v384 = vmul.f32 %v381, 0.5
        %v385 = vmul.f32 %v383, 0.5
        %v386 = vmul.f32 %v384, 1.442695
        %v387 = vpow.pop %v386
        %v388 = vmul.f32 %v385, 1.442695
        %v389 = vpow.pop %v388
        %v390 = vld [vmem:[%s260] sm:$0xff]
        %v391 = vld [vmem:[%s260 + $0x8] sm:$0xff]
        %v392 = vmul.f32 %v390, %v387
        %v393 = vmul.f32 %v391, %v389
        %v394 = vadd.f32 %v392, %v380
        %v395 = vadd.f32 %v393, %v382
        %396 = vst [vmem:[%s290] sm:$0xff] %v394
        %397 = vst [vmem:[%s290 + $0x8] sm:$0xff] %v380
        %398 = vst [vmem:[%s290 + $0x10] sm:$0xff] %v381
        %399 = vst [vmem:[%s290 + $0x18] sm:$0xff] %v395
        %400 = vst [vmem:[%s290 + $0x20] sm:$0xff] %v382
        %401 = vst [vmem:[%s290 + $0x28] sm:$0xff] %v383
        %s402 = sand.u32 %s127, 1
        %s403 = scalar_lea.sflag [#allocation4], %s402
        %s404 = sand.u32 %s127, 1
        %s405 = smul.addr %s404, 48
        %s406 = scalar_lea.vmem [#allocation10], %s405
        // Predicated region
        $region53: #{tpu_custom_call.1} parent=35 // pred_check
          %p407 = pneg %p137
        $region54: #{tpu_custom_call.1} parent=35 // pred_check_branch
          %409 = sbr.rel (%p407) target = $region56
        $region55: #{tpu_custom_call.1} parent=35 // pred_region
          %s410 = smul.u32 2, %s25
          %412 = vsyncadd %s403, 0
          %s413 = smul.addr %s410, 3
          %s414 = smul.addr %s413, 8
          %s415 = scalar_lea.hbm %s4, %s414
          %s416 = sshll.u32 %s406, 4
          %s417 = int_to_ptr.vmem [resolvable:$true] %s416
          %s418 = sshll.u32 %s415, 4
          %s419 = int_to_ptr.hbm [resolvable:$true] %s418
          %424 = dma.vmem_to_hbm [thread:$0]  %s417, 768, %s419, %s403, 384, 384, 24
        $region56: #{tpu_custom_call.1} parent=35 // pred_fallthru
          _
      $region36: #{tpu_custom_call.1} parent=5 // pred_fallthru
        _
      %p425 = scmp.le.s32.totalorder 2, %s20
      // Predicated region
      $region57: #{tpu_custom_call.1} parent=5 // pred_check
        %p426 = pneg %p425
      $region58: #{tpu_custom_call.1} parent=5 // pred_check_branch
        %428 = sbr.rel (%p426) target = $region60
      $region59: #{tpu_custom_call.1} parent=5 // pred_region
        %s429 = ssub.s32 %s20, 2
        // Predicated region
        $region61: #{tpu_custom_call.1} parent=59 // pred_check
          %p430 = pneg %p143
        $region62: #{tpu_custom_call.1} parent=59 // pred_check_branch
          %432 = sbr.rel (%p430) target = $region64
        $region63: #{tpu_custom_call.1} parent=59 // pred_region
          %s433 = sand.u32 %s128, 1
          %s434 = scalar_lea.sflag [#allocation4], %s433
          %s435 = sand.u32 %s128, 1
          %s436 = smul.addr %s435, 48
          %s437 = scalar_lea.vmem [#allocation10], %s436
          %439 = dma.done %s434, 768
        $region64: #{tpu_custom_call.1} parent=59 // pred_fallthru
          _
      $region60: #{tpu_custom_call.1} parent=5 // pred_fallthru
        _
    $region6: #{tpu_custom_call.1} parent=1 // loop_footer
      %s24 = sadd.s32 1, %s20
    $region7: #{tpu_custom_call.1} parent=1 // loop_footer_branch
      %19 = sbr.rel target = $region3
    $region8: #{tpu_custom_call.1} parent=1 // loop_exit
      _
    %440 = vsyncpa [#allocation3], 1
    %s441 = scalar_lea.sflag [#allocation3], 1
    %442 = vsyncpa %s441, 1
    %443 = vsyncpa [#allocation6], 1
    %444 = vsyncpa [#allocation9], 1
    %s445 = scalar_lea.sflag [#allocation9], 1
    %446 = vsyncpa %s445, 1
    %447 = vsyncpa [#allocation4], 1
    %s448 = scalar_lea.sflag [#allocation4], 1
    %449 = vsyncpa %s448, 1

</llo_original>
